<compile_context>
chip_gen: v6e
topology: v6e:2x2x1
jax: 0.10.0
libtpu: 0.0.40
codegen_flags: <defaults>
</compile_context>

<pallas_src>
import math

import jax
import jax.numpy as jnp
from jax.experimental import pallas as pl
from jax.experimental.pallas import tpu as pltpu


def build_positional_encoding(dim: int, max_len: int = 5000,
                              dtype=jnp.float32) -> jnp.ndarray:
    """PE buffer identical to the PyTorch __init__, stored as [max_len, dim].

    Stored directly in the compute dtype so the forward pass never pays a
    per-call f32->bf16 cast + HBM roundtrip of the whole buffer.
    """
    assert dim % 2 == 0, "PositionalEncoding requires an even embedding dim"
    position = jnp.arange(max_len, dtype=jnp.float32)[:, None]            # [max_len, 1]
    div_term = jnp.exp(jnp.arange(0, dim, 2, dtype=jnp.float32)
                       * (-math.log(10000.0) / dim))                      # [dim//2]
    ang = position * div_term                                             # [max_len, dim//2]
    pe = jnp.zeros((max_len, dim), jnp.float32)
    pe = pe.at[:, 0::2].set(jnp.sin(ang))
    pe = pe.at[:, 1::2].set(jnp.cos(ang))
    return pe.astype(dtype)


def _round_up(n: int, m: int) -> int:
    return ((n + m - 1) // m) * m


def _vmem_capacity_bytes() -> int:
    try:
        info = pltpu.get_tpu_info()
        cap = getattr(info, "vmem_capacity_bytes", None)
        if cap:
            return int(cap)
    except Exception:
        pass
    return 64 * 1024 * 1024   # conservative default: v7x per-TensorCore VMEM


# ----------------------------- kernels --------------------------------------

def _pe_add_flat_kernel(x_ref, pe_ref, o_ref):
    # x_ref / o_ref : (seq_tile * batch, dim)   pe_ref : (seq_tile, dim)
    st, d = pe_ref.shape
    rows = x_ref.shape[0]
    b = rows // st
    pe = pe_ref[...]
    if b > 1:
        # Repeat each pe row `batch` times along the sublane axis. Pure
        # VPU/XLU work on 1/batch of the data, hidden under the HBM DMA.
        pe = jnp.broadcast_to(pe[:, None, :], (st, b, d)).reshape(rows, d)
    o_ref[...] = x_ref[...] + pe


def _pe_add_rowsplit_kernel(x_ref, pe_ref, o_ref):
    # Fallback path: x_ref / o_ref : (1, batch_tile, dim)   pe_ref : (1, 1, dim)
    o_ref[...] = x_ref[...] + pe_ref[...]


# ----------------------------- wrapper ---------------------------------------

def positional_encoding_forward(x: jnp.ndarray, pe: jnp.ndarray,
                                *, seq_tile: int | None = None,
                                block_bytes: int | None = None,
                                donate_x: bool = False) -> jnp.ndarray:
    """x: [seq_len, batch, dim]; pe: [max_len, dim] or [max_len, 1, dim]."""
    seq_len, batch, dim = x.shape
    if pe.ndim == 3:                     # accept the PyTorch-layout buffer
        pe = pe.reshape(pe.shape[0], pe.shape[-1])
    max_len, pe_dim = pe.shape
    assert pe_dim == dim and max_len >= seq_len
    if pe.dtype != x.dtype:
        # Prefer building pe in the compute dtype (build_positional_encoding(dtype=...))
        pe = pe.astype(x.dtype)

    itemsize = x.dtype.itemsize
    sub = max(8, 32 // itemsize)                     # sublane quantum per dtype
    usable_vmem = int(_vmem_capacity_bytes() * 0.85)
    if block_bytes is None:
        # ~8 MiB x-blocks: step overhead ~6% on v7x, fits all generations.
        block_bytes = min(8 * 1024 * 1024, max(usable_vmem // 6, 512 * 1024))
    block_bytes = int(block_bytes)

    bytes_per_row = batch * dim * itemsize
    io_alias = {0: 0} if donate_x else {}

    if bytes_per_row <= block_bytes:
        # ---------- main path: flattened [seq_len*batch, dim] streaming add ----------
        if seq_tile is None:
            seq_tile = max(1, block_bytes // bytes_per_row)
            seq_tile = min(seq_tile, seq_len)
            if seq_tile >= seq_len and seq_len > sub:
                # >= 2 roughly equal grid steps so both v7x TensorCores stream.
                seq_tile = pl.cdiv(seq_len, 2)
        seq_tile = _round_up(max(1, min(int(seq_tile), seq_len)), sub)
        row_tile = seq_tile * batch
        num_tiles = pl.cdiv(seq_len, seq_tile)

        x2d = x.reshape(seq_len * batch, dim)        # free view of contiguous layout

        x_blk = row_tile * dim * itemsize
        pe_blk = seq_tile * dim * itemsize
        vmem_limit = min(max(2 * (2 * x_blk + pe_blk) + (2 << 20), 16 << 20),
                         usable_vmem)

        out2d = pl.pallas_call(
            _pe_add_flat_kernel,
            out_shape=jax.ShapeDtypeStruct((seq_len * batch, dim), x.dtype),
            grid=(num_tiles,),
            in_specs=[
                pl.BlockSpec((row_tile, dim), lambda s: (s, 0)),   # x (flat rows)
                pl.BlockSpec((seq_tile, dim), lambda s: (s, 0)),   # pe rows
            ],
            out_specs=pl.BlockSpec((row_tile, dim), lambda s: (s, 0)),
            compiler_params=pltpu.CompilerParams(
                dimension_semantics=("parallel",),
                vmem_limit_bytes=int(vmem_limit),
            ),
            input_output_aliases=io_alias,
        )(x2d, pe)
        return out2d.reshape(seq_len, batch, dim)

    # ---------- fallback: a single seq row (batch*dim) exceeds the block budget ------
    pe3 = pe[:, None, :]                             # [max_len, 1, dim]
    batch_tile = max(sub, (block_bytes // (dim * itemsize)) // sub * sub)
    batch_tile = min(batch_tile, _round_up(batch, sub))
    num_b = pl.cdiv(batch, batch_tile)

    x_blk = batch_tile * dim * itemsize
    pe_blk = sub * dim * itemsize                    # (1,1,dim) block pads sublanes
    vmem_limit = min(max(2 * (2 * x_blk + pe_blk) + (2 << 20), 16 << 20),
                     usable_vmem)

    return pl.pallas_call(
        _pe_add_rowsplit_kernel,
        out_shape=jax.ShapeDtypeStruct((seq_len, batch, dim), x.dtype),
        grid=(seq_len, num_b),
        in_specs=[
            pl.BlockSpec((1, batch_tile, dim), lambda s, b: (s, b, 0)),
            pl.BlockSpec((1, 1, dim), lambda s, b: (s, 0, 0)),
        ],
        out_specs=pl.BlockSpec((1, batch_tile, dim), lambda s, b: (s, b, 0)),
        compiler_params=pltpu.CompilerParams(
            dimension_semantics=("parallel", "parallel"),
            vmem_limit_bytes=int(vmem_limit),
        ),
        input_output_aliases=io_alias,
    )(x, pe3)


if __name__ == "__main__":
    # 1) Toy shape consistent with the module (seq-first layout), small batch/dim.
    seq_len, batch, dim = 8, 2, 32
    x = jax.random.normal(jax.random.PRNGKey(0), (seq_len, batch, dim),
                          dtype=jnp.float32)
    pe = build_positional_encoding(dim, max_len=64)
    out = jax.block_until_ready(positional_encoding_forward(x, pe))
    ref = x + pe[:seq_len][:, None, :]
    assert out.shape == x.shape
    assert jnp.allclose(out, ref, atol=1e-6), "mismatch (toy shape)"

    # 2) Multi-tile grid with a partial last block (regression test for the
    #    boundary-padding behavior x vs pe).
    s2, b2, d2 = 300, 8, 128
    x2 = jax.random.normal(jax.random.PRNGKey(1), (s2, b2, d2), dtype=jnp.float32)
    pe2 = build_positional_encoding(d2, max_len=512)
    out2 = jax.block_until_ready(positional_encoding_forward(x2, pe2, seq_tile=128))
    ref2 = x2 + pe2[:s2][:, None, :]
    assert jnp.allclose(out2, ref2, atol=1e-6), "mismatch (tiled)"

    # 3) bf16 with pe built directly in the compute dtype (no per-call cast).
    s3, b3, d3 = 16, 4, 128
    x3 = jax.random.normal(jax.random.PRNGKey(2), (s3, b3, d3), dtype=jnp.bfloat16)
    pe3 = build_positional_encoding(d3, max_len=32, dtype=jnp.bfloat16)
    out3 = jax.block_until_ready(positional_encoding_forward(x3, pe3))
    ref3 = x3 + pe3[:s3][:, None, :]
    assert jnp.allclose(out3.astype(jnp.float32), ref3.astype(jnp.float32),
                        atol=1e-2), "mismatch (bf16)"

    # 4) Force the batch-tiled fallback path (row bigger than the block budget)
    #    with a deliberately tiny budget; also feeds the PyTorch-layout 3-D pe.
    s4, b4, d4 = 8, 16, 128
    x4 = jax.random.normal(jax.random.PRNGKey(3), (s4, b4, d4), dtype=jnp.float32)
    pe4 = build_positional_encoding(d4, max_len=32)[:, None, :]   # [max_len, 1, dim]
    out4 = jax.block_until_ready(
        positional_encoding_forward(x4, pe4, block_bytes=4096))
    ref4 = x4 + pe4[:s4]
    assert jnp.allclose(out4, ref4, atol=1e-6), "mismatch (batch-tiled fallback)"

    print("KERNEL_OK")
</pallas_src>

<mosaic_0001>
module attributes {stable_mosaic.version = 11 : i64} {
  func.func @_pe_add_flat_kernel(%arg0: i32, %arg1: memref<16x32xf32, #tpu.memory_space<vmem>>, %arg2: memref<8x32xf32, #tpu.memory_space<vmem>>, %arg3: memref<16x32xf32, #tpu.memory_space<vmem>>) attributes {dimension_semantics = [#tpu.dimension_semantics<parallel>], iteration_bounds = array<i64: 1>, scalar_prefetch = 0 : i64, scratch_operands = 0 : i64, tpu.core_type = #tpu.core_type<tc>, window_params = [{transform_indices = @transform_0, window_bounds = array<i64: 16, 32>}, {transform_indices = @transform_1, window_bounds = array<i64: 8, 32>}, {transform_indices = @transform_2, window_bounds = array<i64: 16, 32>}]} {
    %c0 = arith.constant 0 : index
    %c0_0 = arith.constant 0 : index
    %0 = vector.load %arg2[%c0, %c0_0] : memref<8x32xf32, #tpu.memory_space<vmem>>, vector<8x32xf32>
    %1 = vector.shape_cast %0 : vector<8x32xf32> to vector<8x1x32xf32>
    %2 = vector.shape_cast %1 : vector<8x1x32xf32> to vector<8x1x32xf32>
    %3 = vector.broadcast %2 : vector<8x1x32xf32> to vector<8x2x32xf32>
    %4 = vector.shape_cast %3 : vector<8x2x32xf32> to vector<16x32xf32>
    %c0_1 = arith.constant 0 : index
    %c0_2 = arith.constant 0 : index
    %5 = vector.load %arg1[%c0_1, %c0_2] : memref<16x32xf32, #tpu.memory_space<vmem>>, vector<16x32xf32>
    %6 = arith.addf %5, %4 : vector<16x32xf32>
    %c0_3 = arith.constant 0 : index
    %c0_4 = arith.constant 0 : index
    %7 = vector.load %arg3[%c0_3, %c0_4] : memref<16x32xf32, #tpu.memory_space<vmem>>, vector<16x32xf32>
    tpu.vector_store %arg3[%c0_3, %c0_4], %6 {strides = array<i32>} : memref<16x32xf32, #tpu.memory_space<vmem>>, vector<16x32xf32>,
    return
  }
  func.func @transform_0(%arg0: i32) -> (i32, i32) {
    %c0_i32 = arith.constant 0 : i32
    %c0_i32_0 = arith.constant 0 : i32
    return %arg0, %c0_i32 : i32, i32
  }
  func.func @transform_1(%arg0: i32) -> (i32, i32) {
    %c0_i32 = arith.constant 0 : i32
    %c0_i32_0 = arith.constant 0 : i32
    return %arg0, %c0_i32 : i32, i32
  }
  func.func @transform_2(%arg0: i32) -> (i32, i32) {
    %c0_i32 = arith.constant 0 : i32
    %c0_i32_0 = arith.constant 0 : i32
    return %arg0, %c0_i32 : i32, i32
  }
}

</mosaic_0001>

<llo_original>
// kernel: tpu_custom_call.1
$region0: #{tpu_custom_call.1}
  #allocation0 [shape = 'u32[]', space=smem, size = 0x4, offset = 0x4, fixed_abs, tag = 'smem constant byte address 0x4 - core index']
  #allocation1 [shape = 'u32[144,128]{1,0:T(1,128)}', space=vmem, size = 0x12000, scoped, tag = 'internal scratch']
  %s0 = inlined_call_operand.vmem [shape: f32[16,32], index: 0, kind: input, shape index: {}]
  %s1 = inlined_call_operand.vmem [shape: f32[64,32], index: 1, kind: input, shape index: {}]
  %s2 = inlined_call_operand.hbm [shape: f32[16,32], index: 2, kind: output, shape index: {}]
  %s3 = sld [smem:[#allocation0]]
  $region18: #{tpu_custom_call.1} parent=0
    _
  %s5 = ssub.s32 1, %s3
  %s6 = scalar_select 0, %s5, %s3
  $region1: #{tpu_custom_call.1} parent=0
    #allocation2 [shape = 'u8[8192]{0}', space=vmem, size = 0x2000, scoped, tag = 'output window, operand 0, single buffered']
    #allocation3 [shape = 's32[1]{0}', space=sflag, size = 0x4, scoped, tag = 'scoped memory for tpu_custom_call.1']
    %7 = vsyncpa [#allocation3], 0
    // Predicated region
    $region2: #{tpu_custom_call.1} parent=1 // pred_check
      _
    $region3: #{tpu_custom_call.1} parent=1 // pred_check_branch
      %9 = sbr.rel (0) target = $region5
    $region4: #{tpu_custom_call.1} parent=1 // pred_region
      _
    $region5: #{tpu_custom_call.1} parent=1 // pred_fallthru
      _
    // Predicated region
    $region6: #{tpu_custom_call.1} parent=1 // pred_check
      _
    $region7: #{tpu_custom_call.1} parent=1 // pred_check_branch
      %11 = sbr.rel (0) target = $region9
    $region8: #{tpu_custom_call.1} parent=1 // pred_region
      _
    $region9: #{tpu_custom_call.1} parent=1 // pred_fallthru
      _
    %v12 = vld [vmem:[%s1] sm:$0xff]
    %v14 = vcombine.high %v12, %v12
    %v16 = vunpack.c.l.s4 1966171168
    %v17 = vunpack.c.0.s8 %v16
    %v18 = vlaneseq
    %v19 = vshrl.u32 %v18, 7
    %v20 = vsub.s32 %v17, %v19
    %v21 = vrot.slane %v12, %v20
    %v23 = vunpack.c.l.s4 1966171168
    %v24 = vunpack.c.0.s8 %v23
    %v25 = vlaneseq
    %v26 = vshrl.u32 %v25, 7
    %v27 = vsub.s32 %v24, %v26
    %v28 = vrot.slane %v14, %v27
    %v29 = vcombine.high %v21, %v21
    %v30 = vcombine.high %v28, %v28
    %v32 = vunpack.c.l.s4 1966171168
    %v33 = vunpack.c.0.s8 %v32
    %v34 = vlaneseq
    %v35 = vshrl.u32 %v34, 7
    %v36 = vsub.s32 %v33, %v35
    %v37 = vrot.slane %v21, %v36
    %v39 = vunpack.c.l.s4 1966171168
    %v40 = vunpack.c.0.s8 %v39
    %v41 = vlaneseq
    %v42 = vshrl.u32 %v41, 7
    %v43 = vsub.s32 %v40, %v42
    %v44 = vrot.slane %v28, %v43
    %v46 = vunpack.c.l.s4 1966171168
    %v47 = vunpack.c.0.s8 %v46
    %v48 = vlaneseq
    %v49 = vshrl.u32 %v48, 7
    %v50 = vsub.s32 %v47, %v49
    %v51 = vrot.slane %v29, %v50
    %v53 = vunpack.c.l.s4 1966171168
    %v54 = vunpack.c.0.s8 %v53
    %v55 = vlaneseq
    %v56 = vshrl.u32 %v55, 7
    %v57 = vsub.s32 %v54, %v56
    %v58 = vrot.slane %v30, %v57
    %v59 = vcombine.high %v37, %v37
    %v60 = vcombine.high %v44, %v44
    %v61 = vcombine.high %v51, %v51
    %v62 = vcombine.high %v58, %v58
    %v63 = vlaneseq
    %v64 = vshrl.u32 %v63, 7
    %v65 = vsub.s32 0, %v64
    %v66 = vrot.slane %v37, %v65
    %v67 = vlaneseq
    %v68 = vshrl.u32 %v67, 7
    %v69 = vsub.s32 0, %v68
    %v70 = vrot.slane %v51, %v69
    %v71 = vlaneseq
    %v72 = vshrl.u32 %v71, 7
    %v73 = vsub.s32 0, %v72
    %v74 = vrot.slane %v59, %v73
    %v75 = vlaneseq
    %v76 = vshrl.u32 %v75, 7
    %v77 = vsub.s32 0, %v76
    %v78 = vrot.slane %v61, %v77
    %v79 = vlaneseq
    %v80 = vshrl.u32 %v79, 7
    %v81 = vsub.s32 0, %v80
    %v82 = vrot.slane %v44, %v81
    %v83 = vlaneseq
    %v84 = vshrl.u32 %v83, 7
    %v85 = vsub.s32 0, %v84
    %v86 = vrot.slane %v58, %v85
    %v87 = vlaneseq
    %v88 = vshrl.u32 %v87, 7
    %v89 = vsub.s32 0, %v88
    %v90 = vrot.slane %v60, %v89
    %v91 = vlaneseq
    %v92 = vshrl.u32 %v91, 7
    %v93 = vsub.s32 0, %v92
    %v94 = vrot.slane %v62, %v93
    %v95 = vld [vmem:[%s0] sm:$0xff]
    %v96 = vld [vmem:[%s0 + $0x8] sm:$0xff]
    %v97 = vcombine.low %v66, %v70
    %v98 = vcombine.low %v74, %v78
    %v100 = vunpack.c.l.s4 1983009808
    %v101 = vunpack.c.0.s8 %v100
    %v102 = vlaneseq
    %v103 = vshrl.u32 %v102, 7
    %v104 = vsub.s32 %v101, %v103
    %v105 = vrot.slane %v97, %v104
    %v107 = vunpack.c.l.s4 1983009808
    %v108 = vunpack.c.0.s8 %v107
    %v109 = vlaneseq
    %v110 = vshrl.u32 %v109, 7
    %v111 = vsub.s32 %v108, %v110
    %v112 = vrot.slane %v98, %v111
    %v113 = vcombine.low %v105, %v112
    %v114 = vcombine.low %v82, %v86
    %v115 = vcombine.low %v90, %v94
    %v117 = vunpack.c.l.s4 1983009808
    %v118 = vunpack.c.0.s8 %v117
    %v119 = vlaneseq
    %v120 = vshrl.u32 %v119, 7
    %v121 = vsub.s32 %v118, %v120
    %v122 = vrot.slane %v114, %v121
    %v124 = vunpack.c.l.s4 1983009808
    %v125 = vunpack.c.0.s8 %v124
    %v126 = vlaneseq
    %v127 = vshrl.u32 %v126, 7
    %v128 = vsub.s32 %v125, %v127
    %v129 = vrot.slane %v115, %v128
    %v130 = vcombine.low %v122, %v129
    %v133 = vadd.f32 %v95, %v113
    %v134 = vadd.f32 %v96, %v130
    %vm135 = vcmask 261120
    %136 = vst.msk [vmem:[#allocation2] sm:$0xff] %vm135, %v133
    %137 = vst.msk [vmem:[#allocation2 + $0x8] sm:$0xff] %vm135, %v134
    // Predicated region
    $region10: #{tpu_custom_call.1} parent=1 // pred_check
      _
    $region11: #{tpu_custom_call.1} parent=1 // pred_check_branch
      %139 = sbr.rel (0) target = $region13
    $region12: #{tpu_custom_call.1} parent=1 // pred_region
      %s141 = ssub.s32 256, 256
      %142 = vsyncadd [#allocation3], %s141
      %s143 = sshll.u32 [#allocation2], 4
      %s144 = int_to_ptr.vmem [resolvable:$true] %s143
      %149 = dma.vmem_to_hbm [thread:$0]  %s144, 256, %s2, [#allocation3], 128, 128, 8
    $region13: #{tpu_custom_call.1} parent=1 // pred_fallthru
      _
    // Predicated region
    $region14: #{tpu_custom_call.1} parent=1 // pred_check
      _
    $region15: #{tpu_custom_call.1} parent=1 // pred_check_branch
      %151 = sbr.rel (0) target = $region17
    $region16: #{tpu_custom_call.1} parent=1 // pred_region
      %152 = dma.done [#allocation3], 256
    $region17: #{tpu_custom_call.1} parent=1 // pred_fallthru
      _
    %153 = vsyncpa [#allocation3], 1

</llo_original>
